<compile_context>
chip_gen: v5e
topology: v5e:2x2
jax: 0.10.0
libtpu: 0.0.40
codegen_flags: <defaults>
</compile_context>

<pallas_src>
import functools

import jax
import jax.numpy as jnp
from jax.experimental import pallas as pl
from jax.experimental.pallas import tpu as pltpu


def _round_up(x, m):
    return (x + m - 1) // m * m


def _ceil_div(a, b):
    return (a + b - 1) // b


def _basic_block_kernel(*refs, L, Lp, TB, project):
    # refs (project=True):  x, w1_cat, b1, w2_cat, b2, w3, b3, out
    # refs (project=False): x, w1_cat, b1, w2_cat, b2, out
    if project:
        x_ref, w1_ref, b1_ref, w2_ref, b2_ref, w3_ref, b3_ref, o_ref = refs
    else:
        x_ref, w1_ref, b1_ref, w2_ref, b2_ref, o_ref = refs
        w3_ref = b3_ref = None

    TM = o_ref.shape[0]                      # = TB * Lp (static)

    # Rows that are the first / last *valid* row of a batch item inside this
    # block: shifted neighbours across those rows must contribute zero
    # (== Conv1d zero padding, and no leakage between folded batch items).
    row = jax.lax.broadcasted_iota(jnp.int32, (TM, 1), 0)
    is_first = row == 0
    is_last = row == (L - 1)
    for t in range(1, TB):
        is_first = jnp.logical_or(is_first, row == t * Lp)
        is_last = jnp.logical_or(is_last, row == t * Lp + (L - 1))

    def conv_k3(inp, wcat_ref, b_ref):
        # inp: (TM, C).  out[l] = inp[l-1]@W0 + inp[l]@W1 + inp[l+1]@W2 + b,
        # expressed as ONE (TM, 3C) @ (3C, C_out) matmul on the MXU.
        down = pltpu.roll(inp, shift=1, axis=0)        # row l sees inp[l-1]
        down = jnp.where(is_first, 0.0, down)
        up = pltpu.roll(inp, shift=TM - 1, axis=0)     # row l sees inp[l+1]
        up = jnp.where(is_last, 0.0, up)
        lhs = jnp.concatenate([down, inp, up], axis=-1)
        out = jnp.dot(lhs, wcat_ref[...], preferred_element_type=jnp.float32)
        return out + b_ref[...]                        # bias added once, at end

    x = x_ref[...]
    xr = jnp.maximum(x, 0.0)                                   # relu(x)
    h = jnp.maximum(conv_k3(xr, w1_ref, b1_ref), 0.0)          # relu(conv1)
    out2 = conv_k3(h, w2_ref, b2_ref)                          # conv2

    if project:  # 1x1 projection of the (un-ReLU'd) identity
        ident = jnp.dot(x, w3_ref[...], preferred_element_type=jnp.float32)
        ident = ident + b3_ref[...]
    else:
        ident = x

    o_ref[...] = jnp.maximum(out2 + ident, 0.0).astype(o_ref.dtype)


def _prep_weights(params, Cp_in, Cp_out, project):
    """PyTorch Conv1d weights -> lane-padded, tap-concatenated matrices."""
    w1, b1, w2, b2, w3, b3 = params

    def pad2(a, rows, cols):
        return jnp.pad(a, ((0, rows - a.shape[0]), (0, cols - a.shape[1])))

    # Conv1d weight (C_out, C_in, K): tap k multiplies x[l + k - 1].
    w1_cat = jnp.concatenate(
        [pad2(w1[:, :, k].T, Cp_in, Cp_out) for k in range(3)], axis=0)
    w2_cat = jnp.concatenate(
        [pad2(w2[:, :, k].T, Cp_out, Cp_out) for k in range(3)], axis=0)
    b1_p = pad2(b1.reshape(1, -1), 1, Cp_out)
    b2_p = pad2(b2.reshape(1, -1), 1, Cp_out)
    out = [w1_cat, b1_p, w2_cat, b2_p]
    if project:
        out.append(pad2(w3[:, :, 0].T, Cp_in, Cp_out))
        out.append(pad2(b3.reshape(1, -1), 1, Cp_out))
    return out


def basic_block_pallas(x_ncl, params):
    """x_ncl: (N, C_in, L) float32, PyTorch-style NCL layout."""
    w1 = params[0]
    N, C_in, L = x_ncl.shape
    C_out = w1.shape[0]
    project = (C_in != C_out)

    Cp_in = _round_up(C_in, 128)     # lane-dense channels
    Cp_out = _round_up(C_out, 128)
    Lp = _round_up(L, 8)             # sublane-aligned per-item length

    # NOTE: a full DPCNN stack should keep activations in this padded
    # channels-last layout between blocks (transpose/pad once at model
    # entry/exit); done per-call here only because the block is standalone.
    x_nlc = jnp.transpose(x_ncl, (0, 2, 1))                       # (N, L, C_in)
    x_nlc = jnp.pad(x_nlc, ((0, 0), (0, Lp - L), (0, Cp_in - C_in)))

    # Fold whole batch items into the row dim: target ~>=128-row MXU tiles,
    # keep >=2 grid steps when possible (v7x megacore), cap rows per step so
    # the double-buffered blocks stay well inside scoped VMEM on v5e/v7x.
    TB = max(1, min(N, _ceil_div(128, Lp)))
    TB = min(TB, max(1, 2048 // Lp))
    while TB > 1 and _ceil_div(N, TB) < 2:
        TB -= 1
    Npad = _ceil_div(N, TB) * TB
    if Npad != N:
        x_nlc = jnp.pad(x_nlc, ((0, Npad - N), (0, 0), (0, 0)))
    x_flat = x_nlc.reshape(Npad * Lp, Cp_in)

    TM = TB * Lp
    grid = (Npad // TB,)

    weights = _prep_weights(params, Cp_in, Cp_out, project)

    in_specs = [
        pl.BlockSpec((TM, Cp_in), lambda i: (i, 0)),
        pl.BlockSpec((3 * Cp_in, Cp_out), lambda i: (0, 0)),
        pl.BlockSpec((1, Cp_out), lambda i: (0, 0)),
        pl.BlockSpec((3 * Cp_out, Cp_out), lambda i: (0, 0)),
        pl.BlockSpec((1, Cp_out), lambda i: (0, 0)),
    ]
    if project:
        in_specs += [
            pl.BlockSpec((Cp_in, Cp_out), lambda i: (0, 0)),
            pl.BlockSpec((1, Cp_out), lambda i: (0, 0)),
        ]

    kernel = functools.partial(_basic_block_kernel, L=L, Lp=Lp, TB=TB,
                               project=project)

    out_flat = pl.pallas_call(
        kernel,
        out_shape=jax.ShapeDtypeStruct((Npad * Lp, Cp_out), jnp.float32),
        grid_spec=pltpu.PrefetchScalarGridSpec(
            num_scalar_prefetch=0,
            grid=grid,
            in_specs=in_specs,
            out_specs=pl.BlockSpec((TM, Cp_out), lambda i: (i, 0)),
        ),
        compiler_params=pltpu.CompilerParams(
            dimension_semantics=("parallel",)),
    )(x_flat, *weights)

    out = out_flat.reshape(Npad, Lp, Cp_out)[:N, :L, :C_out]
    return jnp.transpose(out, (0, 2, 1))                          # (N, C_out, L)


# ----------------- pure-JAX reference (PyTorch semantics, NCL) -----------------
def _conv1d_ref(x, w, b, padding):
    y = jax.lax.conv_general_dilated(
        x, w, window_strides=(1,), padding=[(padding, padding)],
        dimension_numbers=("NCH", "OIH", "NCH"))
    return y + b[None, :, None]


def basic_block_ref(x, params):
    w1, b1, w2, b2, w3, b3 = params
    out = jnp.maximum(x, 0.0)
    out = _conv1d_ref(out, w1, b1, padding=1)
    out = jnp.maximum(out, 0.0)
    out = _conv1d_ref(out, w2, b2, padding=1)
    identity = x
    if out.shape != x.shape:
        identity = _conv1d_ref(x, w3, b3, padding=0)
    return jnp.maximum(out + identity, 0.0)


def _make_params(key, C_in, C_out):
    k1, k2, k3, k4, k5, k6 = jax.random.split(key, 6)
    w1 = jax.random.normal(k1, (C_out, C_in, 3), jnp.float32) * 0.2
    b1 = jax.random.normal(k2, (C_out,), jnp.float32) * 0.1
    w2 = jax.random.normal(k3, (C_out, C_out, 3), jnp.float32) * 0.2
    b2 = jax.random.normal(k4, (C_out,), jnp.float32) * 0.1
    w3 = jax.random.normal(k5, (C_out, C_in, 1), jnp.float32) * 0.2
    b3 = jax.random.normal(k6, (C_out,), jnp.float32) * 0.1
    return (w1, b1, w2, b2, w3, b3)


if __name__ == "__main__":
    key = jax.random.PRNGKey(0)
    kx1, kp1, kx2, kp2 = jax.random.split(key, 4)

    # Case 1: projection path (C_in != C_out), batch folded + batch padding.
    N, C_in, C_out, L = 4, 4, 8, 16
    x1 = jax.random.normal(kx1, (N, C_in, L), jnp.float32)
    p1 = _make_params(kp1, C_in, C_out)
    out1 = jax.block_until_ready(basic_block_pallas(x1, p1))
    ref1 = basic_block_ref(x1, p1)
    assert out1.shape == (N, C_out, L)
    assert jnp.allclose(out1, ref1, atol=1e-4, rtol=1e-4), "mismatch (project)"

    # Case 2: identity path (C_in == C_out), L not a multiple of 8, ragged batch.
    N, C_in, C_out, L = 3, 8, 8, 12
    x2 = jax.random.normal(kx2, (N, C_in, L), jnp.float32)
    p2 = _make_params(kp2, C_in, C_out)
    out2 = jax.block_until_ready(basic_block_pallas(x2, p2))
    ref2 = basic_block_ref(x2, p2)
    assert out2.shape == (N, C_out, L)
    assert jnp.allclose(out2, ref2, atol=1e-4, rtol=1e-4), "mismatch (identity)"

    print("KERNEL_OK")
</pallas_src>

<mosaic_0001>
module attributes {stable_mosaic.version = 11 : i64} {
  func.func @_basic_block_kernel(%arg0: i32, %arg1: memref<48x128xf32, #tpu.memory_space<vmem>>, %arg2: memref<384x128xf32, #tpu.memory_space<vmem>>, %arg3: memref<1x128xf32, #tpu.memory_space<vmem>>, %arg4: memref<384x128xf32, #tpu.memory_space<vmem>>, %arg5: memref<1x128xf32, #tpu.memory_space<vmem>>, %arg6: memref<128x128xf32, #tpu.memory_space<vmem>>, %arg7: memref<1x128xf32, #tpu.memory_space<vmem>>, %arg8: memref<48x128xf32, #tpu.memory_space<vmem>>) attributes {dimension_semantics = [#tpu.dimension_semantics<parallel>], iteration_bounds = array<i64: 2>, scalar_prefetch = 0 : i64, scratch_operands = 0 : i64, tpu.core_type = #tpu.core_type<tc>, window_params = [{transform_indices = @transform_0, window_bounds = array<i64: 48, 128>}, {pipeline_mode = #tpu.pipeline_mode<synchronous>, transform_indices = @transform_1, window_bounds = array<i64: 384, 128>}, {pipeline_mode = #tpu.pipeline_mode<synchronous>, transform_indices = @transform_2, window_bounds = array<i64: 1, 128>}, {pipeline_mode = #tpu.pipeline_mode<synchronous>, transform_indices = @transform_3, window_bounds = array<i64: 384, 128>}, {pipeline_mode = #tpu.pipeline_mode<synchronous>, transform_indices = @transform_4, window_bounds = array<i64: 1, 128>}, {pipeline_mode = #tpu.pipeline_mode<synchronous>, transform_indices = @transform_5, window_bounds = array<i64: 128, 128>}, {pipeline_mode = #tpu.pipeline_mode<synchronous>, transform_indices = @transform_6, window_bounds = array<i64: 1, 128>}, {transform_indices = @transform_7, window_bounds = array<i64: 48, 128>}]} {
    %0 = tpu.iota {dimensions = array<i32: 0>} : vector<48x1xi32>
    %c0_i32 = arith.constant 0 : i32
    %1 = vector.broadcast %c0_i32 : i32 to vector<48x1xi32>
    %2 = arith.cmpi eq, %0, %1 : vector<48x1xi32>
    %c15_i32 = arith.constant 15 : i32
    %3 = vector.broadcast %c15_i32 : i32 to vector<48x1xi32>
    %4 = arith.cmpi eq, %0, %3 : vector<48x1xi32>
    %c16_i32 = arith.constant 16 : i32
    %5 = vector.broadcast %c16_i32 : i32 to vector<48x1xi32>
    %6 = arith.cmpi eq, %0, %5 : vector<48x1xi32>
    %7 = arith.ori %2, %6 : vector<48x1xi1>
    %c31_i32 = arith.constant 31 : i32
    %8 = vector.broadcast %c31_i32 : i32 to vector<48x1xi32>
    %9 = arith.cmpi eq, %0, %8 : vector<48x1xi32>
    %10 = arith.ori %4, %9 : vector<48x1xi1>
    %c32_i32 = arith.constant 32 : i32
    %11 = vector.broadcast %c32_i32 : i32 to vector<48x1xi32>
    %12 = arith.cmpi eq, %0, %11 : vector<48x1xi32>
    %13 = arith.ori %7, %12 : vector<48x1xi1>
    %c47_i32 = arith.constant 47 : i32
    %14 = vector.broadcast %c47_i32 : i32 to vector<48x1xi32>
    %15 = arith.cmpi eq, %0, %14 : vector<48x1xi32>
    %16 = arith.ori %10, %15 : vector<48x1xi1>
    %c0 = arith.constant 0 : index
    %c0_0 = arith.constant 0 : index
    %17 = vector.load %arg1[%c0, %c0_0] : memref<48x128xf32, #tpu.memory_space<vmem>>, vector<48x128xf32>
    %cst = arith.constant 0.000000e+00 : f32
    %18 = vector.broadcast %cst : f32 to vector<48x128xf32>
    %19 = arith.maximumf %17, %18 : vector<48x128xf32>
    %c1_i32 = arith.constant 1 : i32
    %20 = tpu.dynamic_rotate %19 by %c1_i32 dim 0 : vector<48x128xf32>, i32 -> vector<48x128xf32>
    %cst_1 = arith.constant 0.000000e+00 : f32
    %21 = vector.shape_cast %13 : vector<48x1xi1> to vector<48x1xi1>
    %22 = vector.broadcast %21 : vector<48x1xi1> to vector<48x128xi1>
    %23 = vector.broadcast %cst_1 : f32 to vector<48x128xf32>
    %24 = arith.select %22, %23, %20 : vector<48x128xi1>, vector<48x128xf32>
    %c47_i32_2 = arith.constant 47 : i32
    %25 = tpu.dynamic_rotate %19 by %c47_i32_2 dim 0 : vector<48x128xf32>, i32 -> vector<48x128xf32>
    %cst_3 = arith.constant 0.000000e+00 : f32
    %26 = vector.shape_cast %16 : vector<48x1xi1> to vector<48x1xi1>
    %27 = vector.broadcast %26 : vector<48x1xi1> to vector<48x128xi1>
    %28 = vector.broadcast %cst_3 : f32 to vector<48x128xf32>
    %29 = arith.select %27, %28, %25 : vector<48x128xi1>, vector<48x128xf32>
    %30 = tpu.concatenate %24, %19, %29 in 1 : vector<48x128xf32>, vector<48x128xf32>, vector<48x128xf32> -> vector<48x384xf32>
    %c0_4 = arith.constant 0 : index
    %c0_5 = arith.constant 0 : index
    %31 = vector.load %arg2[%c0_4, %c0_5] : memref<384x128xf32, #tpu.memory_space<vmem>>, vector<384x128xf32>
    %cst_6 = arith.constant dense<0.000000e+00> : vector<48x128xf32>
    %32 = tpu.matmul %30, %31, %cst_6 {dimension_numbers = #tpu.dot_dimension_numbers<[1], [0], [0], [1], [0, 0, 1, 1], [], []>} : vector<48x384xf32>, vector<384x128xf32>, vector<48x128xf32> -> vector<48x128xf32>
    %c0_7 = arith.constant 0 : index
    %c0_8 = arith.constant 0 : index
    %33 = vector.load %arg3[%c0_7, %c0_8] : memref<1x128xf32, #tpu.memory_space<vmem>>, vector<1x128xf32>
    %34 = vector.broadcast %33 : vector<1x128xf32> to vector<48x128xf32>
    %35 = arith.addf %32, %34 : vector<48x128xf32>
    %cst_9 = arith.constant 0.000000e+00 : f32
    %36 = vector.broadcast %cst_9 : f32 to vector<48x128xf32>
    %37 = arith.maximumf %35, %36 : vector<48x128xf32>
    %c1_i32_10 = arith.constant 1 : i32
    %38 = tpu.dynamic_rotate %37 by %c1_i32_10 dim 0 : vector<48x128xf32>, i32 -> vector<48x128xf32>
    %cst_11 = arith.constant 0.000000e+00 : f32
    %39 = vector.shape_cast %13 : vector<48x1xi1> to vector<48x1xi1>
    %40 = vector.broadcast %39 : vector<48x1xi1> to vector<48x128xi1>
    %41 = vector.broadcast %cst_11 : f32 to vector<48x128xf32>
    %42 = arith.select %40, %41, %38 : vector<48x128xi1>, vector<48x128xf32>
    %c47_i32_12 = arith.constant 47 : i32
    %43 = tpu.dynamic_rotate %37 by %c47_i32_12 dim 0 : vector<48x128xf32>, i32 -> vector<48x128xf32>
    %cst_13 = arith.constant 0.000000e+00 : f32
    %44 = vector.shape_cast %16 : vector<48x1xi1> to vector<48x1xi1>
    %45 = vector.broadcast %44 : vector<48x1xi1> to vector<48x128xi1>
    %46 = vector.broadcast %cst_13 : f32 to vector<48x128xf32>
    %47 = arith.select %45, %46, %43 : vector<48x128xi1>, vector<48x128xf32>
    %48 = tpu.concatenate %42, %37, %47 in 1 : vector<48x128xf32>, vector<48x128xf32>, vector<48x128xf32> -> vector<48x384xf32>
    %c0_14 = arith.constant 0 : index
    %c0_15 = arith.constant 0 : index
    %49 = vector.load %arg4[%c0_14, %c0_15] : memref<384x128xf32, #tpu.memory_space<vmem>>, vector<384x128xf32>
    %cst_16 = arith.constant dense<0.000000e+00> : vector<48x128xf32>
    %50 = tpu.matmul %48, %49, %cst_16 {dimension_numbers = #tpu.dot_dimension_numbers<[1], [0], [0], [1], [0, 0, 1, 1], [], []>} : vector<48x384xf32>, vector<384x128xf32>, vector<48x128xf32> -> vector<48x128xf32>
    %c0_17 = arith.constant 0 : index
    %c0_18 = arith.constant 0 : index
    %51 = vector.load %arg5[%c0_17, %c0_18] : memref<1x128xf32, #tpu.memory_space<vmem>>, vector<1x128xf32>
    %52 = vector.broadcast %51 : vector<1x128xf32> to vector<48x128xf32>
    %53 = arith.addf %50, %52 : vector<48x128xf32>
    %c0_19 = arith.constant 0 : index
    %c0_20 = arith.constant 0 : index
    %54 = vector.load %arg6[%c0_19, %c0_20] : memref<128x128xf32, #tpu.memory_space<vmem>>, vector<128x128xf32>
    %cst_21 = arith.constant dense<0.000000e+00> : vector<48x128xf32>
    %55 = tpu.matmul %17, %54, %cst_21 {dimension_numbers = #tpu.dot_dimension_numbers<[1], [0], [0], [1], [0, 0, 1, 1], [], []>} : vector<48x128xf32>, vector<128x128xf32>, vector<48x128xf32> -> vector<48x128xf32>
    %c0_22 = arith.constant 0 : index
    %c0_23 = arith.constant 0 : index
    %56 = vector.load %arg7[%c0_22, %c0_23] : memref<1x128xf32, #tpu.memory_space<vmem>>, vector<1x128xf32>
    %57 = vector.broadcast %56 : vector<1x128xf32> to vector<48x128xf32>
    %58 = arith.addf %55, %57 : vector<48x128xf32>
    %59 = arith.addf %53, %58 : vector<48x128xf32>
    %cst_24 = arith.constant 0.000000e+00 : f32
    %60 = vector.broadcast %cst_24 : f32 to vector<48x128xf32>
    %61 = arith.maximumf %59, %60 : vector<48x128xf32>
    %c0_25 = arith.constant 0 : index
    %c0_26 = arith.constant 0 : index
    %62 = vector.load %arg8[%c0_25, %c0_26] : memref<48x128xf32, #tpu.memory_space<vmem>>, vector<48x128xf32>
    tpu.vector_store %arg8[%c0_25, %c0_26], %61 {strides = array<i32>} : memref<48x128xf32, #tpu.memory_space<vmem>>, vector<48x128xf32>,
    return
  }
  func.func @transform_0(%arg0: i32) -> (i32, i32) {
    %c0_i32 = arith.constant 0 : i32
    %c0_i32_0 = arith.constant 0 : i32
    return %arg0, %c0_i32 : i32, i32
  }
  func.func @transform_1(%arg0: i32) -> (i32, i32) {
    %c0_i32 = arith.constant 0 : i32
    %c0_i32_0 = arith.constant 0 : i32
    %c0_i32_1 = arith.constant 0 : i32
    return %c0_i32, %c0_i32_0 : i32, i32
  }
  func.func @transform_2(%arg0: i32) -> (i32, i32) {
    %c0_i32 = arith.constant 0 : i32
    %c0_i32_0 = arith.constant 0 : i32
    %c0_i32_1 = arith.constant 0 : i32
    return %c0_i32, %c0_i32_0 : i32, i32
  }
  func.func @transform_3(%arg0: i32) -> (i32, i32) {
    %c0_i32 = arith.constant 0 : i32
    %c0_i32_0 = arith.constant 0 : i32
    %c0_i32_1 = arith.constant 0 : i32
    return %c0_i32, %c0_i32_0 : i32, i32
  }
  func.func @transform_4(%arg0: i32) -> (i32, i32) {
    %c0_i32 = arith.constant 0 : i32
    %c0_i32_0 = arith.constant 0 : i32
    %c0_i32_1 = arith.constant 0 : i32
    return %c0_i32, %c0_i32_0 : i32, i32
  }
  func.func @transform_5(%arg0: i32) -> (i32, i32) {
    %c0_i32 = arith.constant 0 : i32
    %c0_i32_0 = arith.constant 0 : i32
    %c0_i32_1 = arith.constant 0 : i32
    return %c0_i32, %c0_i32_0 : i32, i32
  }
  func.func @transform_6(%arg0: i32) -> (i32, i32) {
    %c0_i32 = arith.constant 0 : i32
    %c0_i32_0 = arith.constant 0 : i32
    %c0_i32_1 = arith.constant 0 : i32
    return %c0_i32, %c0_i32_0 : i32, i32
  }
  func.func @transform_7(%arg0: i32) -> (i32, i32) {
    %c0_i32 = arith.constant 0 : i32
    %c0_i32_0 = arith.constant 0 : i32
    return %arg0, %c0_i32 : i32, i32
  }
}

</mosaic_0001>

<llo_original>
// kernel: tpu_custom_call.1
$region0: #{tpu_custom_call.1}
  #allocation0 [shape = 'u32[]', space=smem, size = 0x4, offset = 0x4, fixed_abs, tag = 'smem constant byte address 0x4 - core index']
  #allocation1 [shape = 'u32[72,128]{1,0:T(1,128)}', space=vmem, size = 0x9000, scoped, tag = 'internal scratch']
  %s0 = inlined_call_operand.hbm [shape: f32[96,128], index: 0, kind: input, shape index: {}]
  %s1 = inlined_call_operand.hbm [shape: f32[384,128], index: 1, kind: input, shape index: {}]
  %s2 = inlined_call_operand.vmem [shape: f32[1,128], index: 2, kind: input, shape index: {}]
  %s3 = inlined_call_operand.hbm [shape: f32[384,128], index: 3, kind: input, shape index: {}]
  %s4 = inlined_call_operand.vmem [shape: f32[1,128], index: 4, kind: input, shape index: {}]
  %s5 = inlined_call_operand.hbm [shape: f32[128,128], index: 5, kind: input, shape index: {}]
  %s6 = inlined_call_operand.vmem [shape: f32[1,128], index: 6, kind: input, shape index: {}]
  %s7 = inlined_call_operand.hbm [shape: f32[96,128], index: 7, kind: output, shape index: {}]
  %s8 = sld [smem:[#allocation0]]
  $region77: #{tpu_custom_call.1} parent=0
    _
  %s10 = ssub.s32 1, %s8
  %s11 = scalar_select 0, %s10, %s8
  $region1: #{tpu_custom_call.1} parent=0
    #allocation2 [shape = 'u8[49152]{0}', space=vmem, size = 0xc000, scoped, tag = 'input window, operand 0']
    #allocation3 [shape = 's32[2]{0}', space=sflag, size = 0x8, scoped, tag = 'scoped memory for tpu_custom_call.1']
    #allocation4 [shape = 's32[2]{0}', space=sflag, size = 0x8, scoped, tag = 'scoped memory for tpu_custom_call.1']
    #allocation5 [shape = 'u8[196608]{0}', space=vmem, size = 0x30000, scoped, tag = 'input window, operand 1, single buffered']
    #allocation6 [shape = 's32[1]{0}', space=sflag, size = 0x4, scoped, tag = 'scoped memory for tpu_custom_call.1']
    #allocation7 [shape = 'u8[196608]{0}', space=vmem, size = 0x30000, scoped, tag = 'input window, operand 3, single buffered']
    #allocation8 [shape = 'u8[65536]{0}', space=vmem, size = 0x10000, scoped, tag = 'input window, operand 5, single buffered']
    #allocation9 [shape = 's32[1]{0}', space=sflag, size = 0x4, scoped, tag = 'scoped memory for tpu_custom_call.1']
    #allocation10 [shape = 'u8[49152]{0}', space=vmem, size = 0xc000, scoped, tag = 'output window, operand 0']
    %12 = vsyncpa [#allocation3], 0
    %s13 = scalar_lea.sflag [#allocation3], 1
    %14 = vsyncpa %s13, 0
    %15 = vsyncpa [#allocation6], 0
    %16 = vsyncpa [#allocation9], 0
    %17 = vsyncpa [#allocation4], 0
    %s18 = scalar_lea.sflag [#allocation4], 1
    %19 = vsyncpa %s18, 0
    loop: start=0, step=1, limit=4
    $region2: #{tpu_custom_call.1} parent=1 // loop_pre_header
      _
    $region3: #{tpu_custom_call.1} parent=1 // loop_header
      %s21 = sphi 0, %s25
      %p22 = scmp.ge.s32.totalorder %s21, 4
      %s31 = sphi 0, %s33
      %s34 = sphi 0, %s31
      %s35 = sphi 0, %s34
      %s51 = sphi 0, %s35
      %s55 = sphi 0, %s55
      %s57 = sphi 0, %s55
      %s58 = sphi 0, %s57
      %s72 = sphi 0, %s58
      %s76 = sphi 0, %s76
      %s78 = sphi 0, %s76
      %s79 = sphi 0, %s78
      %s93 = sphi 0, %s79
      %s97 = sphi 0, %s97
      %s99 = sphi 0, %s97
      %s100 = sphi 0, %s99
      %s114 = sphi 0, %s100
      %s118 = sphi 0, %s118
      %s120 = sphi 0, %s118
      %s121 = sphi 0, %s120
      %s135 = sphi 0, %s121
      %s139 = sphi 0, %s139
      %s141 = sphi 0, %s139
      %s142 = sphi 0, %s141
      %s156 = sphi 0, %s142
      %s160 = sphi 0, %s160
      %s162 = sphi 0, %s160
      %s163 = sphi 0, %s162
      %s177 = sphi 0, %s163
      %s183 = sphi 0, %s185
      %s186 = sphi 0, %s183
      %s187 = sphi 0, %s186
      %s203 = sphi 0, %s187
    $region4: #{tpu_custom_call.1} parent=1 // loop_header_branch
      %24 = sbr.rel (%p22) target = $region8
    $region5: #{tpu_custom_call.1} parent=1 // loop_body
      %s26 = ssub.s32 %s21, 1
      %s27 = ssub.s32 %s21, 2
      %s28 = sadd.s32 %s21, 1
      %s29 = ssub.s32 %s21, %s28
      %p30 = scmp.eq.s32.totalorder %s29, 0
      %s32 = sadd.s32 %s31, 1
      %s33 = scalar_select %p30, %s31, %s32
      %p36 = pneg %p30
      %p37 = scmp.eq.s32.totalorder %s21, 1
      %p38 = por %p36, %p37
      %p39 = scmp.ne.s32.totalorder %s31, %s34
      %p40 = scmp.eq.s32.totalorder %s21, 0
      %p41 = por %p39, %p40
      %p42 = scmp.ne.s32.totalorder %s31, %s34
      %p43 = scmp.eq.s32.totalorder %s26, 1
      %p44 = por %p42, %p43
      %p45 = scmp.ne.s32.totalorder %s34, %s35
      %p46 = scmp.eq.s32.totalorder %s26, 0
      %p47 = por %p45, %p46
      %p48 = scmp.ne.s32.totalorder %s34, %s35
      %p49 = scmp.eq.s32.totalorder %s27, 1
      %p50 = por %p48, %p49
      %p52 = scmp.ne.s32.totalorder %s35, %s51
      %p53 = scmp.eq.s32.totalorder %s27, 0
      %p54 = por %p52, %p53
      %s56 = sadd.s32 %s55, 1
      %p59 = scmp.eq.s32.totalorder %s21, 1
      %p60 = scmp.ne.s32.totalorder %s55, %s57
      %p61 = scmp.eq.s32.totalorder %s21, 0
      %p62 = por %p60, %p61
      %p63 = scmp.ne.s32.totalorder %s55, %s57
      %p64 = scmp.eq.s32.totalorder %s26, 1
      %p65 = por %p63, %p64
      %p66 = scmp.ne.s32.totalorder %s57, %s58
      %p67 = scmp.eq.s32.totalorder %s26, 0
      %p68 = por %p66, %p67
      %p69 = scmp.ne.s32.totalorder %s57, %s58
      %p70 = scmp.eq.s32.totalorder %s27, 1
      %p71 = por %p69, %p70
      %p73 = scmp.ne.s32.totalorder %s58, %s72
      %p74 = scmp.eq.s32.totalorder %s27, 0
      %p75 = por %p73, %p74
      %s77 = sadd.s32 %s76, 1
      %p80 = scmp.eq.s32.totalorder %s21, 1
      %p81 = scmp.ne.s32.totalorder %s76, %s78
      %p82 = scmp.eq.s32.totalorder %s21, 0
      %p83 = por %p81, %p82
      %p84 = scmp.ne.s32.totalorder %s76, %s78
      %p85 = scmp.eq.s32.totalorder %s26, 1
      %p86 = por %p84, %p85
      %p87 = scmp.ne.s32.totalorder %s78, %s79
      %p88 = scmp.eq.s32.totalorder %s26, 0
      %p89 = por %p87, %p88
      %p90 = scmp.ne.s32.totalorder %s78, %s79
      %p91 = scmp.eq.s32.totalorder %s27, 1
      %p92 = por %p90, %p91
      %p94 = scmp.ne.s32.totalorder %s79, %s93
      %p95 = scmp.eq.s32.totalorder %s27, 0
      %p96 = por %p94, %p95
      %s98 = sadd.s32 %s97, 1
      %p101 = scmp.eq.s32.totalorder %s21, 1
      %p102 = scmp.ne.s32.totalorder %s97, %s99
      %p103 = scmp.eq.s32.totalorder %s21, 0
      %p104 = por %p102, %p103
      %p105 = scmp.ne.s32.totalorder %s97, %s99
      %p106 = scmp.eq.s32.totalorder %s26, 1
      %p107 = por %p105, %p106
      %p108 = scmp.ne.s32.totalorder %s99, %s100
      %p109 = scmp.eq.s32.totalorder %s26, 0
      %p110 = por %p108, %p109
      %p111 = scmp.ne.s32.totalorder %s99, %s100
      %p112 = scmp.eq.s32.totalorder %s27, 1
      %p113 = por %p111, %p112
      %p115 = scmp.ne.s32.totalorder %s100, %s114
      %p116 = scmp.eq.s32.totalorder %s27, 0
      %p117 = por %p115, %p116
      %s119 = sadd.s32 %s118, 1
      %p122 = scmp.eq.s32.totalorder %s21, 1
      %p123 = scmp.ne.s32.totalorder %s118, %s120
      %p124 = scmp.eq.s32.totalorder %s21, 0
      %p125 = por %p123, %p124
      %p126 = scmp.ne.s32.totalorder %s118, %s120
      %p127 = scmp.eq.s32.totalorder %s26, 1
      %p128 = por %p126, %p127
      %p129 = scmp.ne.s32.totalorder %s120, %s121
      %p130 = scmp.eq.s32.totalorder %s26, 0
      %p131 = por %p129, %p130
      %p132 = scmp.ne.s32.totalorder %s120, %s121
      %p133 = scmp.eq.s32.totalorder %s27, 1
      %p134 = por %p132, %p133
      %p136 = scmp.ne.s32.totalorder %s121, %s135
      %p137 = scmp.eq.s32.totalorder %s27, 0
      %p138 = por %p136, %p137
      %s140 = sadd.s32 %s139, 1
      %p143 = scmp.eq.s32.totalorder %s21, 1
      %p144 = scmp.ne.s32.totalorder %s139, %s141
      %p145 = scmp.eq.s32.totalorder %s21, 0
      %p146 = por %p144, %p145
      %p147 = scmp.ne.s32.totalorder %s139, %s141
      %p148 = scmp.eq.s32.totalorder %s26, 1
      %p149 = por %p147, %p148
      %p150 = scmp.ne.s32.totalorder %s141, %s142
      %p151 = scmp.eq.s32.totalorder %s26, 0
      %p152 = por %p150, %p151
      %p153 = scmp.ne.s32.totalorder %s141, %s142
      %p154 = scmp.eq.s32.totalorder %s27, 1
      %p155 = por %p153, %p154
      %p157 = scmp.ne.s32.totalorder %s142, %s156
      %p158 = scmp.eq.s32.totalorder %s27, 0
      %p159 = por %p157, %p158
      %s161 = sadd.s32 %s160, 1
      %p164 = scmp.eq.s32.totalorder %s21, 1
      %p165 = scmp.ne.s32.totalorder %s160, %s162
      %p166 = scmp.eq.s32.totalorder %s21, 0
      %p167 = por %p165, %p166
      %p168 = scmp.ne.s32.totalorder %s160, %s162
      %p169 = scmp.eq.s32.totalorder %s26, 1
      %p170 = por %p168, %p169
      %p171 = scmp.ne.s32.totalorder %s162, %s163
      %p172 = scmp.eq.s32.totalorder %s26, 0
      %p173 = por %p171, %p172
      %p174 = scmp.ne.s32.totalorder %s162, %s163
      %p175 = scmp.eq.s32.totalorder %s27, 1
      %p176 = por %p174, %p175
      %p178 = scmp.ne.s32.totalorder %s163, %s177
      %p179 = scmp.eq.s32.totalorder %s27, 0
      %p180 = por %p178, %p179
      %s181 = ssub.s32 %s21, %s28
      %p182 = scmp.eq.s32.totalorder %s181, 0
      %s184 = sadd.s32 %s183, 1
      %s185 = scalar_select %p182, %s183, %s184
      %p188 = pneg %p182
      %p189 = scmp.eq.s32.totalorder %s21, 1
      %p190 = por %p188, %p189
      %p191 = scmp.ne.s32.totalorder %s183, %s186
      %p192 = scmp.eq.s32.totalorder %s21, 0
      %p193 = por %p191, %p192
      %p194 = scmp.ne.s32.totalorder %s183, %s186
      %p195 = scmp.eq.s32.totalorder %s26, 1
      %p196 = por %p194, %p195
      %p197 = scmp.ne.s32.totalorder %s186, %s187
      %p198 = scmp.eq.s32.totalorder %s26, 0
      %p199 = por %p197, %p198
      %p200 = scmp.ne.s32.totalorder %s186, %s187
      %p201 = scmp.eq.s32.totalorder %s27, 1
      %p202 = por %p200, %p201
      %p204 = scmp.ne.s32.totalorder %s187, %s203
      %p205 = scmp.eq.s32.totalorder %s27, 0
      %p206 = por %p204, %p205
      %p207 = scmp.le.s32.totalorder 1, %s21
      %p208 = scmp.lt.s32.totalorder %s21, 3
      %p209 = pnand %p207, %p208
      %p210 = pneg %p209
      // Predicated region
      $region9: #{tpu_custom_call.1} parent=5 // pred_check
        _
      $region10: #{tpu_custom_call.1} parent=5 // pred_check_branch
        %212 = sbr.rel (%p209) target = $region12
      $region11: #{tpu_custom_call.1} parent=5 // pred_region
        %s213 = ssub.s32 %s21, 1
        // Predicated region
        $region13: #{tpu_custom_call.1} parent=11 // pred_check
          %p214 = pneg %p68
        $region14: #{tpu_custom_call.1} parent=11 // pred_check_branch
          %216 = sbr.rel (%p214) target = $region16
        $region15: #{tpu_custom_call.1} parent=11 // pred_region
          %218 = vsyncadd [#allocation6], 0
          %s219 = sshll.u32 %s1, 4
          %s220 = int_to_ptr.hbm [resolvable:$true] %s219
          %s221 = sshll.u32 [#allocation5], 4
          %s222 = int_to_ptr.vmem [resolvable:$true] %s221
          %227 = dma.hbm_to_vmem [thread:$0]  %s220, 6144, %s222, [#allocation6], 128, 128, 8
        $region16: #{tpu_custom_call.1} parent=11 // pred_fallthru
          _
        // Predicated region
        $region17: #{tpu_custom_call.1} parent=11 // pred_check
          %p228 = pneg %p89
        $region18: #{tpu_custom_call.1} parent=11 // pred_check_branch
          %230 = sbr.rel (%p228) target = $region20
        $region19: #{tpu_custom_call.1} parent=11 // pred_region
          _
        $region20: #{tpu_custom_call.1} parent=11 // pred_fallthru
          _
        // Predicated region
        $region21: #{tpu_custom_call.1} parent=11 // pred_check
          %p231 = pneg %p110
        $region22: #{tpu_custom_call.1} parent=11 // pred_check_branch
          %233 = sbr.rel (%p231) target = $region24
        $region23: #{tpu_custom_call.1} parent=11 // pred_region
          %235 = vsyncadd [#allocation6], 0
          %s236 = sshll.u32 %s3, 4
          %s237 = int_to_ptr.hbm [resolvable:$true] %s236
          %s238 = sshll.u32 [#allocation7], 4
          %s239 = int_to_ptr.vmem [resolvable:$true] %s238
          %244 = dma.hbm_to_vmem [thread:$0]  %s237, 6144, %s239, [#allocation6], 128, 128, 8
        $region24: #{tpu_custom_call.1} parent=11 // pred_fallthru
          _
        // Predicated region
        $region25: #{tpu_custom_call.1} parent=11 // pred_check
          %p245 = pneg %p131
        $region26: #{tpu_custom_call.1} parent=11 // pred_check_branch
          %247 = sbr.rel (%p245) target = $region28
        $region27: #{tpu_custom_call.1} parent=11 // pred_region
          _
        $region28: #{tpu_custom_call.1} parent=11 // pred_fallthru
          _
        // Predicated region
        $region29: #{tpu_custom_call.1} parent=11 // pred_check
          %p248 = pneg %p152
        $region30: #{tpu_custom_call.1} parent=11 // pred_check_branch
          %250 = sbr.rel (%p248) target = $region32
        $region31: #{tpu_custom_call.1} parent=11 // pred_region
          %252 = vsyncadd [#allocation9], 0
          %s253 = sshll.u32 %s5, 4
          %s254 = int_to_ptr.hbm [resolvable:$true] %s253
          %s255 = sshll.u32 [#allocation8], 4
          %s256 = int_to_ptr.vmem [resolvable:$true] %s255
          %261 = dma.hbm_to_vmem [thread:$0]  %s254, 2048, %s256, [#allocation9], 128, 128, 8
        $region32: #{tpu_custom_call.1} parent=11 // pred_fallthru
          _
        // Predicated region
        $region33: #{tpu_custom_call.1} parent=11 // pred_check
          %p262 = pneg %p173
        $region34: #{tpu_custom_call.1} parent=11 // pred_check_branch
          %264 = sbr.rel (%p262) target = $region36
        $region35: #{tpu_custom_call.1} parent=11 // pred_region
          _
        $region36: #{tpu_custom_call.1} parent=11 // pred_fallthru
          _
      $region12: #{tpu_custom_call.1} parent=5 // pred_fallthru
        _
      %p265 = scmp.lt.s32.totalorder %s21, 2
      // Predicated region
      $region37: #{tpu_custom_call.1} parent=5 // pred_check
        %p266 = pneg %p265
      $region38: #{tpu_custom_call.1} parent=5 // pred_check_branch
        %268 = sbr.rel (%p266) target = $region40
      $region39: #{tpu_custom_call.1} parent=5 // pred_region
        // Predicated region
        $region41: #{tpu_custom_call.1} parent=39 // pred_check
          %p269 = pneg %p41
        $region42: #{tpu_custom_call.1} parent=39 // pred_check_branch
          %271 = sbr.rel (%p269) target = $region44
        $region43: #{tpu_custom_call.1} parent=39 // pred_region
          %s272 = sand.u32 %s31, 1
          %s273 = scalar_lea.sflag [#allocation3], %s272
          %s274 = sand.u32 %s31, 1
          %s275 = smul.addr %s274, 48
          %s276 = scalar_lea.vmem [#allocation2], %s275
          %s277 = smul.u32 6, %s21
          %279 = vsyncadd %s273, 0
          %s280 = smul.addr %s277, 8
          %s281 = scalar_lea.hbm %s0, %s280
          %s282 = sshll.u32 %s281, 4
          %s283 = int_to_ptr.hbm [resolvable:$true] %s282
          %s284 = sshll.u32 %s276, 4
          %s285 = int_to_ptr.vmem [resolvable:$true] %s284
          %290 = dma.hbm_to_vmem [thread:$0]  %s283, 768, %s285, %s273, 128, 128, 8
        $region44: #{tpu_custom_call.1} parent=39 // pred_fallthru
          _
      $region40: #{tpu_custom_call.1} parent=5 // pred_fallthru
        _
      %p291 = scmp.le.s32.totalorder 1, %s21
      %p292 = scmp.lt.s32.totalorder %s21, 3
      %p293 = pnand %p291, %p292
      %p294 = pneg %p293
      // Predicated region
      $region45: #{tpu_custom_call.1} parent=5 // pred_check
        _
      $region46: #{tpu_custom_call.1} parent=5 // pred_check_branch
        %296 = sbr.rel (%p293) target = $region48
      $region47: #{tpu_custom_call.1} parent=5 // pred_region
        %s297 = ssub.s32 %s21, 1
        %s298 = sand.u32 %s34, 1
        %s299 = scalar_lea.sflag [#allocation3], %s298
        %s300 = sand.u32 %s34, 1
        %s301 = smul.addr %s300, 48
        %s302 = scalar_lea.vmem [#allocation2], %s301
        // Predicated region
        $region49: #{tpu_custom_call.1} parent=47 // pred_check
          %p303 = pneg %p47
        $region50: #{tpu_custom_call.1} parent=47 // pred_check_branch
          %305 = sbr.rel (%p303) target = $region52
        $region51: #{tpu_custom_call.1} parent=47 // pred_region
          %307 = dma.done %s299, 768
        $region52: #{tpu_custom_call.1} parent=47 // pred_fallthru
          _
        // Predicated region
        $region53: #{tpu_custom_call.1} parent=47 // pred_check
          %p308 = pneg %p68
        $region54: #{tpu_custom_call.1} parent=47 // pred_check_branch
          %310 = sbr.rel (%p308) target = $region56
        $region55: #{tpu_custom_call.1} parent=47 // pred_region
          %312 = dma.done [#allocation6], 6144
        $region56: #{tpu_custom_call.1} parent=47 // pred_fallthru
          _
        // Predicated region
        $region57: #{tpu_custom_call.1} parent=47 // pred_check
          %p313 = pneg %p110
        $region58: #{tpu_custom_call.1} parent=47 // pred_check_branch
          %315 = sbr.rel (%p313) target = $region60
        $region59: #{tpu_custom_call.1} parent=47 // pred_region
          %317 = dma.done [#allocation6], 6144
        $region60: #{tpu_custom_call.1} parent=47 // pred_fallthru
          _
        // Predicated region
        $region61: #{tpu_custom_call.1} parent=47 // pred_check
          %p318 = pneg %p152
        $region62: #{tpu_custom_call.1} parent=47 // pred_check_branch
          %320 = sbr.rel (%p318) target = $region64
        $region63: #{tpu_custom_call.1} parent=47 // pred_region
          %322 = dma.done [#allocation9], 2048
        $region64: #{tpu_custom_call.1} parent=47 // pred_fallthru
          _
        %s323 = sand.u32 %s34, 1
        %s324 = scalar_lea.sflag [#allocation3], %s323
        %s325 = sand.u32 %s34, 1
        %s326 = smul.addr %s325, 48
        %s327 = scalar_lea.vmem [#allocation2], %s326
        %p328 = pneg %p47
        %p329 = pneg %p44
        %p330 = pneg %p68
        %p331 = pneg %p65
        %p332 = pneg %p89
        %p333 = pneg %p86
        %p334 = pneg %p110
        %p335 = pneg %p107
        %p336 = pneg %p131
        %p337 = pneg %p128
        %p338 = pneg %p152
        %p339 = pneg %p149
        %p340 = pneg %p173
        %p341 = pneg %p170
        %p342 = pneg %p199
        %p343 = pneg %p196
        %s344 = sand.u32 %s186, 1
        %s345 = scalar_lea.sflag [#allocation4], %s344
        %s346 = sand.u32 %s186, 1
        %s347 = smul.addr %s346, 48
        %s348 = scalar_lea.vmem [#allocation10], %s347
        %s349 = smul.u32 6, %s26
        %s350 = smul.u32 6, %s26
        %v351 = vlaneseq
        %v352 = vshrl.u32 %v351, 7
        %v353 = vadd.s32 %v352, 8
        %v354 = vadd.s32 %v352, 16
        %v355 = vadd.s32 %v352, 24
        %v356 = vadd.s32 %v352, 32
        %v357 = vadd.s32 %v352, 40
        %vm358 = vcmp.eq.s32.totalorder %v352, 0
        %vm359 = vcmp.eq.s32.totalorder %v353, 0
        %vm360 = vcmp.eq.s32.totalorder %v354, 0
        %vm361 = vcmp.eq.s32.totalorder %v355, 0
        %vm362 = vcmp.eq.s32.totalorder %v356, 0
        %vm363 = vcmp.eq.s32.totalorder %v357, 0
        %vm364 = vcmp.eq.s32.totalorder %v352, 15
        %vm365 = vcmp.eq.s32.totalorder %v353, 15
        %vm366 = vcmp.eq.s32.totalorder %v354, 15
        %vm367 = vcmp.eq.s32.totalorder %v355, 15
        %vm368 = vcmp.eq.s32.totalorder %v356, 15
        %vm369 = vcmp.eq.s32.totalorder %v357, 15
        %vm370 = vcmp.eq.s32.totalorder %v352, 16
        %vm371 = vcmp.eq.s32.totalorder %v353, 16
        %vm372 = vcmp.eq.s32.totalorder %v354, 16
        %vm373 = vcmp.eq.s32.totalorder %v355, 16
        %vm374 = vcmp.eq.s32.totalorder %v356, 16
        %vm375 = vcmp.eq.s32.totalorder %v357, 16
        %vm376 = vmor %vm358, %vm370
        %vm377 = vmor %vm359, %vm371
        %vm378 = vmor %vm360, %vm372
        %vm379 = vmor %vm361, %vm373
        %vm380 = vmor %vm362, %vm374
        %vm381 = vmor %vm363, %vm375
        %vm382 = vcmp.eq.s32.totalorder %v352, 31
        %vm383 = vcmp.eq.s32.totalorder %v353, 31
        %vm384 = vcmp.eq.s32.totalorder %v354, 31
        %vm385 = vcmp.eq.s32.totalorder %v355, 31
        %vm386 = vcmp.eq.s32.totalorder %v356, 31
        %vm387 = vcmp.eq.s32.totalorder %v357, 31
        %vm388 = vmor %vm364, %vm382
        %vm389 = vmor %vm365, %vm383
        %vm390 = vmor %vm366, %vm384
        %vm391 = vmor %vm367, %vm385
        %vm392 = vmor %vm368, %vm386
        %vm393 = vmor %vm369, %vm387
        %vm394 = vcmp.eq.s32.totalorder %v352, 32
        %vm395 = vcmp.eq.s32.totalorder %v353, 32
        %vm396 = vcmp.eq.s32.totalorder %v354, 32
        %vm397 = vcmp.eq.s32.totalorder %v355, 32
        %vm398 = vcmp.eq.s32.totalorder %v356, 32
        %vm399 = vcmp.eq.s32.totalorder %v357, 32
        %vm400 = vmor %vm376, %vm394
        %vm401 = vmor %vm377, %vm395
        %vm402 = vmor %vm378, %vm396
        %vm403 = vmor %vm379, %vm397
        %vm404 = vmor %vm380, %vm398
        %vm405 = vmor %vm381, %vm399
        %vm406 = vcmp.eq.s32.totalorder %v352, 47
        %vm407 = vcmp.eq.s32.totalorder %v353, 47
        %vm408 = vcmp.eq.s32.totalorder %v354, 47
        %vm409 = vcmp.eq.s32.totalorder %v355, 47
        %vm410 = vcmp.eq.s32.totalorder %v356, 47
        %vm411 = vcmp.eq.s32.totalorder %v357, 47
        %vm412 = vmor %vm388, %vm406
        %vm413 = vmor %vm389, %vm407
        %vm414 = vmor %vm390, %vm408
        %vm415 = vmor %vm391, %vm409
        %vm416 = vmor %vm392, %vm410
        %vm417 = vmor %vm393, %vm411
        %v418 = vld [vmem:[%s302] sm:$0xff]
        %v419 = vld [vmem:[%s302 + $0x8] sm:$0xff]
        %v420 = vld [vmem:[%s302 + $0x10] sm:$0xff]
        %v421 = vld [vmem:[%s302 + $0x18] sm:$0xff]
        %v422 = vld [vmem:[%s302 + $0x20] sm:$0xff]
        %v423 = vld [vmem:[%s302 + $0x28] sm:$0xff]
        %v424 = vmax.f32 %v418, 0.0
        %v425 = vmax.f32 %v419, 0.0
        %v426 = vmax.f32 %v420, 0.0
        %v427 = vmax.f32 %v421, 0.0
        %v428 = vmax.f32 %v422, 0.0
        %v429 = vmax.f32 %v423, 0.0
        %v430 = vrot.slane %v424, 7
        %v431 = vrot.slane %v425, 7
        %v432 = vrot.slane %v426, 7
        %v433 = vrot.slane %v427, 7
        %v434 = vrot.slane %v428, 7
        %v435 = vrot.slane %v429, 7
        %vm436 = vcmp.lt.s32.totalorder %v352, 1
        %v437 = vsel %vm436, %v434, %v435
        %v438 = vsel %vm436, %v433, %v434
        %v439 = vsel %vm436, %v432, %v433
        %v440 = vsel %vm436, %v431, %v432
        %v441 = vsel %vm436, %v430, %v431
        %v442 = vsel %vm436, %v435, %v430
        %v443 = vsel %vm400, 1, 0
        %v444 = vsel %vm401, 1, 0
        %v445 = vsel %vm402, 1, 0
        %v446 = vsel %vm403, 1, 0
        %v447 = vsel %vm404, 1, 0
        %v448 = vsel %vm405, 1, 0
        %vm449 = vcmp.eq.s32.totalorder %v443, 1
        %vm450 = vcmp.eq.s32.totalorder %v444, 1
        %vm451 = vcmp.eq.s32.totalorder %v445, 1
        %vm452 = vcmp.eq.s32.totalorder %v446, 1
        %vm453 = vcmp.eq.s32.totalorder %v447, 1
        %vm454 = vcmp.eq.s32.totalorder %v448, 1
        %v455 = vsel %vm449, 0.0, %v442
        %v456 = vsel %vm450, 0.0, %v441
        %v457 = vsel %vm451, 0.0, %v440
        %v458 = vsel %vm452, 0.0, %v439
        %v459 = vsel %vm453, 0.0, %v438
        %v460 = vsel %vm454, 0.0, %v437
        %v461 = vrot.slane %v424, 1
        %v462 = vrot.slane %v425, 1
        %v463 = vrot.slane %v426, 1
        %v464 = vrot.slane %v427, 1
        %v465 = vrot.slane %v428, 1
        %v466 = vrot.slane %v429, 1
        %vm467 = vcmp.lt.s32.totalorder %v352, 7
        %v468 = vsel %vm467, %v465, %v466
        %v469 = vsel %vm467, %v464, %v465
        %v470 = vsel %vm467, %v463, %v464
        %v471 = vsel %vm467, %v462, %v463
        %v472 = vsel %vm467, %v461, %v462
        %v473 = vsel %vm467, %v466, %v461
        %v474 = vsel %vm412, 1, 0
        %v475 = vsel %vm413, 1, 0
        %v476 = vsel %vm414, 1, 0
        %v477 = vsel %vm415, 1, 0
        %v478 = vsel %vm416, 1, 0
        %v479 = vsel %vm417, 1, 0
        %vm480 = vcmp.eq.s32.totalorder %v474, 1
        %vm481 = vcmp.eq.s32.totalorder %v475, 1
        %vm482 = vcmp.eq.s32.totalorder %v476, 1
        %vm483 = vcmp.eq.s32.totalorder %v477, 1
        %vm484 = vcmp.eq.s32.totalorder %v478, 1
        %vm485 = vcmp.eq.s32.totalorder %v479, 1
        %v486 = vsel %vm480, 0.0, %v472
        %v487 = vsel %vm481, 0.0, %v471
        %v488 = vsel %vm482, 0.0, %v470
        %v489 = vsel %vm483, 0.0, %v469
        %v490 = vsel %vm484, 0.0, %v468
        %v491 = vsel %vm485, 0.0, %v473
        %v492 = vld [vmem:[#allocation5] sm:$0xff]
        %v493 = vld [vmem:[#allocation5 + $0x8] sm:$0xff]
        %v494 = vld [vmem:[#allocation5 + $0x10] sm:$0xff]
        %v495 = vld [vmem:[#allocation5 + $0x18] sm:$0xff]
        %v496 = vld [vmem:[#allocation5 + $0x20] sm:$0xff]
        %v497 = vld [vmem:[#allocation5 + $0x28] sm:$0xff]
        %v498 = vld [vmem:[#allocation5 + $0x30] sm:$0xff]
        %v499 = vld [vmem:[#allocation5 + $0x38] sm:$0xff]
        %v500 = vld [vmem:[#allocation5 + $0x40] sm:$0xff]
        %v501 = vld [vmem:[#allocation5 + $0x48] sm:$0xff]
        %v502 = vld [vmem:[#allocation5 + $0x50] sm:$0xff]
        %v503 = vld [vmem:[#allocation5 + $0x58] sm:$0xff]
        %v504 = vld [vmem:[#allocation5 + $0x60] sm:$0xff]
        %v505 = vld [vmem:[#allocation5 + $0x68] sm:$0xff]
        %v506 = vld [vmem:[#allocation5 + $0x70] sm:$0xff]
        %v507 = vld [vmem:[#allocation5 + $0x78] sm:$0xff]
        %v508 = vld [vmem:[#allocation5 + $0x80] sm:$0xff]
        %v509 = vld [vmem:[#allocation5 + $0x88] sm:$0xff]
        %v510 = vld [vmem:[#allocation5 + $0x90] sm:$0xff]
        %v511 = vld [vmem:[#allocation5 + $0x98] sm:$0xff]
        %v512 = vld [vmem:[#allocation5 + $0xa0] sm:$0xff]
        %v513 = vld [vmem:[#allocation5 + $0xa8] sm:$0xff]
        %v514 = vld [vmem:[#allocation5 + $0xb0] sm:$0xff]
        %v515 = vld [vmem:[#allocation5 + $0xb8] sm:$0xff]
        %v516 = vld [vmem:[#allocation5 + $0xc0] sm:$0xff]
        %v517 = vld [vmem:[#allocation5 + $0xc8] sm:$0xff]
        %v518 = vld [vmem:[#allocation5 + $0xd0] sm:$0xff]
        %v519 = vld [vmem:[#allocation5 + $0xd8] sm:$0xff]
        %v520 = vld [vmem:[#allocation5 + $0xe0] sm:$0xff]
        %v521 = vld [vmem:[#allocation5 + $0xe8] sm:$0xff]
        %v522 = vld [vmem:[#allocation5 + $0xf0] sm:$0xff]
        %v523 = vld [vmem:[#allocation5 + $0xf8] sm:$0xff]
        %v524 = vld [vmem:[#allocation5 + $0x100] sm:$0xff]
        %v525 = vld [vmem:[#allocation5 + $0x108] sm:$0xff]
        %v526 = vld [vmem:[#allocation5 + $0x110] sm:$0xff]
        %v527 = vld [vmem:[#allocation5 + $0x118] sm:$0xff]
        %v528 = vld [vmem:[#allocation5 + $0x120] sm:$0xff]
        %v529 = vld [vmem:[#allocation5 + $0x128] sm:$0xff]
        %v530 = vld [vmem:[#allocation5 + $0x130] sm:$0xff]
        %v531 = vld [vmem:[#allocation5 + $0x138] sm:$0xff]
        %v532 = vld [vmem:[#allocation5 + $0x140] sm:$0xff]
        %v533 = vld [vmem:[#allocation5 + $0x148] sm:$0xff]
        %v534 = vld [vmem:[#allocation5 + $0x150] sm:$0xff]
        %v535 = vld [vmem:[#allocation5 + $0x158] sm:$0xff]
        %v536 = vld [vmem:[#allocation5 + $0x160] sm:$0xff]
        %v537 = vld [vmem:[#allocation5 + $0x168] sm:$0xff]
        %v538 = vld [vmem:[#allocation5 + $0x170] sm:$0xff]
        %v539 = vld [vmem:[#allocation5 + $0x178] sm:$0xff]
        %v540 = vld [vmem:[%s2] sm:$0x1]
        %v542 = vperm.slane %v540, 0
        %544 = vmatpush.msra.mxu0 %v507
        %545 = vmatpush.msra.mxu0 %v506
        %546 = vmatpush.msra.mxu0 %v505
        %547 = vmatpush.msra.mxu0 %v504
        %548 = vmatpush.msra.mxu0 %v503
        %549 = vmatpush.msra.mxu0 %v502
        %550 = vmatpush.msra.mxu0 %v501
        %551 = vmatpush.msra.mxu0 %v500
        %552 = vmatpush.msra.mxu0 %v499
        %553 = vmatpush.msra.mxu0 %v498
        %554 = vmatpush.msra.mxu0 %v497
        %555 = vmatpush.msra.mxu0 %v496
        %556 = vmatpush.msra.mxu0 %v495
        %557 = vmatpush.msra.mxu0 %v494
        %558 = vmatpush.msra.mxu0 %v493
        %559 = vmatpush.msra.mxu0 %v492
        %560 = vmatmul.f32.gmra.mxu0 %v455
        %v561 = vpop.f32.mrf.mxu0
        %v562 = vadd.f32 %v542, %v561
        %563 = vmatmul.f32.gmra.mxu0 %v456
        %v564 = vpop.f32.mrf.mxu0
        %v565 = vadd.f32 %v542, %v564
        %566 = vmatmul.f32.gmra.mxu0 %v457
        %v567 = vpop.f32.mrf.mxu0
        %v568 = vadd.f32 %v542, %v567
        %569 = vmatmul.f32.gmra.mxu0 %v458
        %v570 = vpop.f32.mrf.mxu0
        %v571 = vadd.f32 %v542, %v570
        %572 = vmatmul.f32.gmra.mxu0 %v459
        %v573 = vpop.f32.mrf.mxu0
        %v574 = vadd.f32 %v542, %v573
        %575 = vmatmul.f32.gmra.mxu0 %v460
        %v576 = vpop.f32.mrf.mxu0
        %v577 = vadd.f32 %v542, %v576
        %578 = vdwg.mxu0
        %579 = vmatpush.msra.mxu0 %v523
        %580 = vmatpush.msra.mxu0 %v522
        %581 = vmatpush.msra.mxu0 %v521
        %582 = vmatpush.msra.mxu0 %v520
        %583 = vmatpush.msra.mxu0 %v519
        %584 = vmatpush.msra.mxu0 %v518
        %585 = vmatpush.msra.mxu0 %v517
        %586 = vmatpush.msra.mxu0 %v516
        %587 = vmatpush.msra.mxu0 %v515
        %588 = vmatpush.msra.mxu0 %v514
        %589 = vmatpush.msra.mxu0 %v513
        %590 = vmatpush.msra.mxu0 %v512
        %591 = vmatpush.msra.mxu0 %v511
        %592 = vmatpush.msra.mxu0 %v510
        %593 = vmatpush.msra.mxu0 %v509
        %594 = vmatpush.msra.mxu0 %v508
        %595 = vmatmul.f32.gmra.mxu0 %v424
        %v596 = vpop.f32.mrf.mxu0
        %v597 = vadd.f32 %v562, %v596
        %598 = vmatmul.f32.gmra.mxu0 %v425
        %v599 = vpop.f32.mrf.mxu0
        %v600 = vadd.f32 %v565, %v599
        %601 = vmatmul.f32.gmra.mxu0 %v426
        %v602 = vpop.f32.mrf.mxu0
        %v603 = vadd.f32 %v568, %v602
        %604 = vmatmul.f32.gmra.mxu0 %v427
        %v605 = vpop.f32.mrf.mxu0
        %v606 = vadd.f32 %v571, %v605
        %607 = vmatmul.f32.gmra.mxu0 %v428
        %v608 = vpop.f32.mrf.mxu0
        %v609 = vadd.f32 %v574, %v608
        %610 = vmatmul.f32.gmra.mxu0 %v429
        %v611 = vpop.f32.mrf.mxu0
        %v612 = vadd.f32 %v577, %v611
        %613 = vdwg.mxu0
        %614 = vmatpush.msra.mxu0 %v539
        %615 = vmatpush.msra.mxu0 %v538
        %616 = vmatpush.msra.mxu0 %v537
        %617 = vmatpush.msra.mxu0 %v536
        %618 = vmatpush.msra.mxu0 %v535
        %619 = vmatpush.msra.mxu0 %v534
        %620 = vmatpush.msra.mxu0 %v533
        %621 = vmatpush.msra.mxu0 %v532
        %622 = vmatpush.msra.mxu0 %v531
        %623 = vmatpush.msra.mxu0 %v530
        %624 = vmatpush.msra.mxu0 %v529
        %625 = vmatpush.msra.mxu0 %v528
        %626 = vmatpush.msra.mxu0 %v527
        %627 = vmatpush.msra.mxu0 %v526
        %628 = vmatpush.msra.mxu0 %v525
        %629 = vmatpush.msra.mxu0 %v524
        %630 = vmatmul.f32.gmra.mxu0 %v486
        %v631 = vpop.f32.mrf.mxu0
        %v632 = vadd.f32 %v597, %v631
        %633 = vmatmul.f32.gmra.mxu0 %v487
        %v634 = vpop.f32.mrf.mxu0
        %v635 = vadd.f32 %v600, %v634
        %636 = vmatmul.f32.gmra.mxu0 %v488
        %v637 = vpop.f32.mrf.mxu0
        %v638 = vadd.f32 %v603, %v637
        %639 = vmatmul.f32.gmra.mxu0 %v489
        %v640 = vpop.f32.mrf.mxu0
        %v641 = vadd.f32 %v606, %v640
        %642 = vmatmul.f32.gmra.mxu0 %v490
        %v643 = vpop.f32.mrf.mxu0
        %v644 = vadd.f32 %v609, %v643
        %645 = vmatmul.f32.gmra.mxu0 %v491
        %v646 = vpop.f32.mrf.mxu0
        %v647 = vadd.f32 %v612, %v646
        %648 = vdwg.mxu0
        %v649 = vmax.f32 %v632, 0.0
        %v650 = vmax.f32 %v635, 0.0
        %v651 = vmax.f32 %v638, 0.0
        %v652 = vmax.f32 %v641, 0.0
        %v653 = vmax.f32 %v644, 0.0
        %v654 = vmax.f32 %v647, 0.0
        %v655 = vrot.slane %v649, 7
        %v656 = vrot.slane %v650, 7
        %v657 = vrot.slane %v651, 7
        %v658 = vrot.slane %v652, 7
        %v659 = vrot.slane %v653, 7
        %v660 = vrot.slane %v654, 7
        %v661 = vsel %vm436, %v659, %v660
        %v662 = vsel %vm436, %v658, %v659
        %v663 = vsel %vm436, %v657, %v658
        %v664 = vsel %vm436, %v656, %v657
        %v665 = vsel %vm436, %v655, %v656
        %v666 = vsel %vm436, %v660, %v655
        %v667 = vsel %vm449, 0.0, %v666
        %v668 = vsel %vm450, 0.0, %v665
        %v669 = vsel %vm451, 0.0, %v664
        %v670 = vsel %vm452, 0.0, %v663
        %v671 = vsel %vm453, 0.0, %v662
        %v672 = vsel %vm454, 0.0, %v661
        %v673 = vrot.slane %v649, 1
        %v674 = vrot.slane %v650, 1
        %v675 = vrot.slane %v651, 1
        %v676 = vrot.slane %v652, 1
        %v677 = vrot.slane %v653, 1
        %v678 = vrot.slane %v654, 1
        %v679 = vsel %vm467, %v677, %v678
        %v680 = vsel %vm467, %v676, %v677
        %v681 = vsel %vm467, %v675, %v676
        %v682 = vsel %vm467, %v674, %v675
        %v683 = vsel %vm467, %v673, %v674
        %v684 = vsel %vm467, %v678, %v673
        %v685 = vsel %vm480, 0.0, %v683
        %v686 = vsel %vm481, 0.0, %v682
        %v687 = vsel %vm482, 0.0, %v681
        %v688 = vsel %vm483, 0.0, %v680
        %v689 = vsel %vm484, 0.0, %v679
        %v690 = vsel %vm485, 0.0, %v684
        %v691 = vld [vmem:[#allocation7] sm:$0xff]
        %v692 = vld [vmem:[#allocation7 + $0x8] sm:$0xff]
        %v693 = vld [vmem:[#allocation7 + $0x10] sm:$0xff]
        %v694 = vld [vmem:[#allocation7 + $0x18] sm:$0xff]
        %v695 = vld [vmem:[#allocation7 + $0x20] sm:$0xff]
        %v696 = vld [vmem:[#allocation7 + $0x28] sm:$0xff]
        %v697 = vld [vmem:[#allocation7 + $0x30] sm:$0xff]
        %v698 = vld [vmem:[#allocation7 + $0x38] sm:$0xff]
        %v699 = vld [vmem:[#allocation7 + $0x40] sm:$0xff]
        %v700 = vld [vmem:[#allocation7 + $0x48] sm:$0xff]
        %v701 = vld [vmem:[#allocation7 + $0x50] sm:$0xff]
        %v702 = vld [vmem:[#allocation7 + $0x58] sm:$0xff]
        %v703 = vld [vmem:[#allocation7 + $0x60] sm:$0xff]
        %v704 = vld [vmem:[#allocation7 + $0x68] sm:$0xff]
        %v705 = vld [vmem:[#allocation7 + $0x70] sm:$0xff]
        %v706 = vld [vmem:[#allocation7 + $0x78] sm:$0xff]
        %v707 = vld [vmem:[#allocation7 + $0x80] sm:$0xff]
        %v708 = vld [vmem:[#allocation7 + $0x88] sm:$0xff]
        %v709 = vld [vmem:[#allocation7 + $0x90] sm:$0xff]
        %v710 = vld [vmem:[#allocation7 + $0x98] sm:$0xff]
        %v711 = vld [vmem:[#allocation7 + $0xa0] sm:$0xff]
        %v712 = vld [vmem:[#allocation7 + $0xa8] sm:$0xff]
        %v713 = vld [vmem:[#allocation7 + $0xb0] sm:$0xff]
        %v714 = vld [vmem:[#allocation7 + $0xb8] sm:$0xff]
        %v715 = vld [vmem:[#allocation7 + $0xc0] sm:$0xff]
        %v716 = vld [vmem:[#allocation7 + $0xc8] sm:$0xff]
        %v717 = vld [vmem:[#allocation7 + $0xd0] sm:$0xff]
        %v718 = vld [vmem:[#allocation7 + $0xd8] sm:$0xff]
        %v719 = vld [vmem:[#allocation7 + $0xe0] sm:$0xff]
        %v720 = vld [vmem:[#allocation7 + $0xe8] sm:$0xff]
        %v721 = vld [vmem:[#allocation7 + $0xf0] sm:$0xff]
        %v722 = vld [vmem:[#allocation7 + $0xf8] sm:$0xff]
        %v723 = vld [vmem:[#allocation7 + $0x100] sm:$0xff]
        %v724 = vld [vmem:[#allocation7 + $0x108] sm:$0xff]
        %v725 = vld [vmem:[#allocation7 + $0x110] sm:$0xff]
        %v726 = vld [vmem:[#allocation7 + $0x118] sm:$0xff]
        %v727 = vld [vmem:[#allocation7 + $0x120] sm:$0xff]
        %v728 = vld [vmem:[#allocation7 + $0x128] sm:$0xff]
        %v729 = vld [vmem:[#allocation7 + $0x130] sm:$0xff]
        %v730 = vld [vmem:[#allocation7 + $0x138] sm:$0xff]
        %v731 = vld [vmem:[#allocation7 + $0x140] sm:$0xff]
        %v732 = vld [vmem:[#allocation7 + $0x148] sm:$0xff]
        %v733 = vld [vmem:[#allocation7 + $0x150] sm:$0xff]
        %v734 = vld [vmem:[#allocation7 + $0x158] sm:$0xff]
        %v735 = vld [vmem:[#allocation7 + $0x160] sm:$0xff]
        %v736 = vld [vmem:[#allocation7 + $0x168] sm:$0xff]
        %v737 = vld [vmem:[#allocation7 + $0x170] sm:$0xff]
        %v738 = vld [vmem:[#allocation7 + $0x178] sm:$0xff]
        %v739 = vld [vmem:[%s4] sm:$0x1]
        %v741 = vperm.slane %v739, 0
        %743 = vmatpush.msra.mxu0 %v706
        %744 = vmatpush.msra.mxu0 %v705
        %745 = vmatpush.msra.mxu0 %v704
        %746 = vmatpush.msra.mxu0 %v703
        %747 = vmatpush.msra.mxu0 %v702
        %748 = vmatpush.msra.mxu0 %v701
        %749 = vmatpush.msra.mxu0 %v700
        %750 = vmatpush.msra.mxu0 %v699
        %751 = vmatpush.msra.mxu0 %v698
        %752 = vmatpush.msra.mxu0 %v697
        %753 = vmatpush.msra.mxu0 %v696
        %754 = vmatpush.msra.mxu0 %v695
        %755 = vmatpush.msra.mxu0 %v694
        %756 = vmatpush.msra.mxu0 %v693
        %757 = vmatpush.msra.mxu0 %v692
        %758 = vmatpush.msra.mxu0 %v691
        %759 = vmatmul.f32.gmra.mxu0 %v667
        %v760 = vpop.f32.mrf.mxu0
        %v761 = vadd.f32 %v741, %v760
        %762 = vmatmul.f32.gmra.mxu0 %v668
        %v763 = vpop.f32.mrf.mxu0
        %v764 = vadd.f32 %v741, %v763
        %765 = vmatmul.f32.gmra.mxu0 %v669
        %v766 = vpop.f32.mrf.mxu0
        %v767 = vadd.f32 %v741, %v766
        %768 = vmatmul.f32.gmra.mxu0 %v670
        %v769 = vpop.f32.mrf.mxu0
        %v770 = vadd.f32 %v741, %v769
        %771 = vmatmul.f32.gmra.mxu0 %v671
        %v772 = vpop.f32.mrf.mxu0
        %v773 = vadd.f32 %v741, %v772
        %774 = vmatmul.f32.gmra.mxu0 %v672
        %v775 = vpop.f32.mrf.mxu0
        %v776 = vadd.f32 %v741, %v775
        %777 = vdwg.mxu0
        %778 = vmatpush.msra.mxu0 %v722
        %779 = vmatpush.msra.mxu0 %v721
        %780 = vmatpush.msra.mxu0 %v720
        %781 = vmatpush.msra.mxu0 %v719
        %782 = vmatpush.msra.mxu0 %v718
        %783 = vmatpush.msra.mxu0 %v717
        %784 = vmatpush.msra.mxu0 %v716
        %785 = vmatpush.msra.mxu0 %v715
        %786 = vmatpush.msra.mxu0 %v714
        %787 = vmatpush.msra.mxu0 %v713
        %788 = vmatpush.msra.mxu0 %v712
        %789 = vmatpush.msra.mxu0 %v711
        %790 = vmatpush.msra.mxu0 %v710
        %791 = vmatpush.msra.mxu0 %v709
        %792 = vmatpush.msra.mxu0 %v708
        %793 = vmatpush.msra.mxu0 %v707
        %794 = vmatmul.f32.gmra.mxu0 %v649
        %v795 = vpop.f32.mrf.mxu0
        %v796 = vadd.f32 %v761, %v795
        %797 = vmatmul.f32.gmra.mxu0 %v650
        %v798 = vpop.f32.mrf.mxu0
        %v799 = vadd.f32 %v764, %v798
        %800 = vmatmul.f32.gmra.mxu0 %v651
        %v801 = vpop.f32.mrf.mxu0
        %v802 = vadd.f32 %v767, %v801
        %803 = vmatmul.f32.gmra.mxu0 %v652
        %v804 = vpop.f32.mrf.mxu0
        %v805 = vadd.f32 %v770, %v804
        %806 = vmatmul.f32.gmra.mxu0 %v653
        %v807 = vpop.f32.mrf.mxu0
        %v808 = vadd.f32 %v773, %v807
        %809 = vmatmul.f32.gmra.mxu0 %v654
        %v810 = vpop.f32.mrf.mxu0
        %v811 = vadd.f32 %v776, %v810
        %812 = vdwg.mxu0
        %813 = vmatpush.msra.mxu0 %v738
        %814 = vmatpush.msra.mxu0 %v737
        %815 = vmatpush.msra.mxu0 %v736
        %816 = vmatpush.msra.mxu0 %v735
        %817 = vmatpush.msra.mxu0 %v734
        %818 = vmatpush.msra.mxu0 %v733
        %819 = vmatpush.msra.mxu0 %v732
        %820 = vmatpush.msra.mxu0 %v731
        %821 = vmatpush.msra.mxu0 %v730
        %822 = vmatpush.msra.mxu0 %v729
        %823 = vmatpush.msra.mxu0 %v728
        %824 = vmatpush.msra.mxu0 %v727
        %825 = vmatpush.msra.mxu0 %v726
        %826 = vmatpush.msra.mxu0 %v725
        %827 = vmatpush.msra.mxu0 %v724
        %828 = vmatpush.msra.mxu0 %v723
        %829 = vmatmul.f32.gmra.mxu0 %v685
        %v830 = vpop.f32.mrf.mxu0
        %v831 = vadd.f32 %v796, %v830
        %832 = vmatmul.f32.gmra.mxu0 %v686
        %v833 = vpop.f32.mrf.mxu0
        %v834 = vadd.f32 %v799, %v833
        %835 = vmatmul.f32.gmra.mxu0 %v687
        %v836 = vpop.f32.mrf.mxu0
        %v837 = vadd.f32 %v802, %v836
        %838 = vmatmul.f32.gmra.mxu0 %v688
        %v839 = vpop.f32.mrf.mxu0
        %v840 = vadd.f32 %v805, %v839
        %841 = vmatmul.f32.gmra.mxu0 %v689
        %v842 = vpop.f32.mrf.mxu0
        %v843 = vadd.f32 %v808, %v842
        %844 = vmatmul.f32.gmra.mxu0 %v690
        %v845 = vpop.f32.mrf.mxu0
        %v846 = vadd.f32 %v811, %v845
        %847 = vdwg.mxu0
        %v848 = vld [vmem:[#allocation8] sm:$0xff]
        %v849 = vld [vmem:[#allocation8 + $0x8] sm:$0xff]
        %v850 = vld [vmem:[#allocation8 + $0x10] sm:$0xff]
        %v851 = vld [vmem:[#allocation8 + $0x18] sm:$0xff]
        %v852 = vld [vmem:[#allocation8 + $0x20] sm:$0xff]
        %v853 = vld [vmem:[#allocation8 + $0x28] sm:$0xff]
        %v854 = vld [vmem:[#allocation8 + $0x30] sm:$0xff]
        %v855 = vld [vmem:[#allocation8 + $0x38] sm:$0xff]
        %v856 = vld [vmem:[#allocation8 + $0x40] sm:$0xff]
        %v857 = vld [vmem:[#allocation8 + $0x48] sm:$0xff]
        %v858 = vld [vmem:[#allocation8 + $0x50] sm:$0xff]
        %v859 = vld [vmem:[#allocation8 + $0x58] sm:$0xff]
        %v860 = vld [vmem:[#allocation8 + $0x60] sm:$0xff]
        %v861 = vld [vmem:[#allocation8 + $0x68] sm:$0xff]
        %v862 = vld [vmem:[#allocation8 + $0x70] sm:$0xff]
        %v863 = vld [vmem:[#allocation8 + $0x78] sm:$0xff]
        %v864 = vld [vmem:[%s6] sm:$0x1]
        %v866 = vperm.slane %v864, 0
        %868 = vmatpush.msra.mxu0 %v863
        %869 = vmatpush.msra.mxu0 %v862
        %870 = vmatpush.msra.mxu0 %v861
        %871 = vmatpush.msra.mxu0 %v860
        %872 = vmatpush.msra.mxu0 %v859
        %873 = vmatpush.msra.mxu0 %v858
        %874 = vmatpush.msra.mxu0 %v857
        %875 = vmatpush.msra.mxu0 %v856
        %876 = vmatpush.msra.mxu0 %v855
        %877 = vmatpush.msra.mxu0 %v854
        %878 = vmatpush.msra.mxu0 %v853
        %879 = vmatpush.msra.mxu0 %v852
        %880 = vmatpush.msra.mxu0 %v851
        %881 = vmatpush.msra.mxu0 %v850
        %882 = vmatpush.msra.mxu0 %v849
        %883 = vmatpush.msra.mxu0 %v848
        %884 = vmatmul.f32.gmra.mxu0 %v418
        %v885 = vpop.f32.mrf.mxu0
        %v886 = vadd.f32 %v866, %v885
        %887 = vmatmul.f32.gmra.mxu0 %v419
        %v888 = vpop.f32.mrf.mxu0
        %v889 = vadd.f32 %v866, %v888
        %890 = vmatmul.f32.gmra.mxu0 %v420
        %v891 = vpop.f32.mrf.mxu0
        %v892 = vadd.f32 %v866, %v891
        %893 = vmatmul.f32.gmra.mxu0 %v421
        %v894 = vpop.f32.mrf.mxu0
        %v895 = vadd.f32 %v866, %v894
        %896 = vmatmul.f32.gmra.mxu0 %v422
        %v897 = vpop.f32.mrf.mxu0
        %v898 = vadd.f32 %v866, %v897
        %899 = vmatmul.f32.gmra.mxu0 %v423
        %v900 = vpop.f32.mrf.mxu0
        %v901 = vadd.f32 %v866, %v900
        %902 = vdwg.mxu0
        %v903 = vadd.f32 %v831, %v886
        %v904 = vadd.f32 %v834, %v889
        %v905 = vadd.f32 %v837, %v892
        %v906 = vadd.f32 %v840, %v895
        %v907 = vadd.f32 %v843, %v898
        %v908 = vadd.f32 %v846, %v901
        %v909 = vmax.f32 %v903, 0.0
        %v910 = vmax.f32 %v904, 0.0
        %v911 = vmax.f32 %v905, 0.0
        %v912 = vmax.f32 %v906, 0.0
        %v913 = vmax.f32 %v907, 0.0
        %v914 = vmax.f32 %v908, 0.0
        %915 = vst [vmem:[%s348] sm:$0xff] %v909
        %916 = vst [vmem:[%s348 + $0x8] sm:$0xff] %v910
        %917 = vst [vmem:[%s348 + $0x10] sm:$0xff] %v911
        %918 = vst [vmem:[%s348 + $0x18] sm:$0xff] %v912
        %919 = vst [vmem:[%s348 + $0x20] sm:$0xff] %v913
        %920 = vst [vmem:[%s348 + $0x28] sm:$0xff] %v914
        %s921 = sand.u32 %s186, 1
        %s922 = scalar_lea.sflag [#allocation4], %s921
        %s923 = sand.u32 %s186, 1
        %s924 = smul.addr %s923, 48
        %s925 = scalar_lea.vmem [#allocation10], %s924
        // Predicated region
        $region65: #{tpu_custom_call.1} parent=47 // pred_check
          %p926 = pneg %p196
        $region66: #{tpu_custom_call.1} parent=47 // pred_check_branch
          %928 = sbr.rel (%p926) target = $region68
        $region67: #{tpu_custom_call.1} parent=47 // pred_region
          %s929 = smul.u32 6, %s26
          %931 = vsyncadd %s922, 0
          %s932 = smul.addr %s929, 8
          %s933 = scalar_lea.hbm %s7, %s932
          %s934 = sshll.u32 %s925, 4
          %s935 = int_to_ptr.vmem [resolvable:$true] %s934
          %s936 = sshll.u32 %s933, 4
          %s937 = int_to_ptr.hbm [resolvable:$true] %s936
          %942 = dma.vmem_to_hbm [thread:$0]  %s935, 768, %s937, %s922, 128, 128, 8
        $region68: #{tpu_custom_call.1} parent=47 // pred_fallthru
          _
      $region48: #{tpu_custom_call.1} parent=5 // pred_fallthru
        _
      %p943 = scmp.le.s32.totalorder 2, %s21
      // Predicated region
      $region69: #{tpu_custom_call.1} parent=5 // pred_check
        %p944 = pneg %p943
      $region70: #{tpu_custom_call.1} parent=5 // pred_check_branch
        %946 = sbr.rel (%p944) target = $region72
      $region71: #{tpu_custom_call.1} parent=5 // pred_region
        %s947 = ssub.s32 %s21, 2
        // Predicated region
        $region73: #{tpu_custom_call.1} parent=71 // pred_check
          %p948 = pneg %p202
        $region74: #{tpu_custom_call.1} parent=71 // pred_check_branch
          %950 = sbr.rel (%p948) target = $region76
        $region75: #{tpu_custom_call.1} parent=71 // pred_region
          %s951 = sand.u32 %s187, 1
          %s952 = scalar_lea.sflag [#allocation4], %s951
          %s953 = sand.u32 %s187, 1
          %s954 = smul.addr %s953, 48
          %s955 = scalar_lea.vmem [#allocation10], %s954
          %957 = dma.done %s952, 768
        $region76: #{tpu_custom_call.1} parent=71 // pred_fallthru
          _
      $region72: #{tpu_custom_call.1} parent=5 // pred_fallthru
        _
    $region6: #{tpu_custom_call.1} parent=1 // loop_footer
      %s25 = sadd.s32 1, %s21
    $region7: #{tpu_custom_call.1} parent=1 // loop_footer_branch
      %20 = sbr.rel target = $region3
    $region8: #{tpu_custom_call.1} parent=1 // loop_exit
      _
    %958 = vsyncpa [#allocation3], 1
    %s959 = scalar_lea.sflag [#allocation3], 1
    %960 = vsyncpa %s959, 1
    %961 = vsyncpa [#allocation6], 1
    %962 = vsyncpa [#allocation9], 1
    %963 = vsyncpa [#allocation4], 1
    %s964 = scalar_lea.sflag [#allocation4], 1
    %965 = vsyncpa %s964, 1

</llo_original>
